<compile_context>
chip_gen: v5e
topology: v5e:2x2
jax: 0.10.0
libtpu: 0.0.40
codegen_flags: <defaults>
</compile_context>

<pallas_src>
import functools

import jax
import jax.numpy as jnp
import numpy as np
from jax.experimental import pallas as pl
from jax.experimental.pallas import tpu as pltpu


def _quant_head_kernel(inp_ref, wcat_ref, bcat_ref, comb_ref,
                       x_out_ref, z_out_ref):
    m = x_out_ref.shape[-1]                       # M = N_books * L_word

    # ---- MXU pass 1 (fused fc + logits), f32 accumulate ----
    # y[:, :M] = X = inp @ W + b           (bit-identical to the unfused fc)
    # y[:, M:] = logits = -tau*(||c||^2 - 2 X_i . c)  (per-book softmax-equal)
    y = jnp.dot(inp_ref[...], wcat_ref[...],
                preferred_element_type=jnp.float32) + bcat_ref[...]
    x = y[:, :m]
    logits = y[:, m:]
    x_out_ref[...] = x.astype(x_out_ref.dtype)

    # Row-global max subtraction: constant per row, hence constant within each
    # book segment -> per-book softmax unchanged (XLU reduce, off the MXU path).
    rmax = jnp.max(logits, axis=-1, keepdims=True)
    e = jnp.exp(logits - rmax)                    # EUP

    # ---- MXU pass 2 (fused per-book sums + Z numerator) ----
    # r[:, :M] = per-book sum of e, broadcast across each book's L_word cols
    # r[:, M:] = concat_i(e_i @ C_i)
    r = jnp.dot(e, comb_ref[...], preferred_element_type=jnp.float32)
    # Clamp: if a whole book underflowed under the row-global max (huge tau_q /
    # badly scaled codebooks), yield 0 instead of Inf/NaN.
    denom = jnp.maximum(r[:, :m], 1e-30)
    z = r[:, m:] * pl.reciprocal(denom, approx=True)
    z_out_ref[...] = z.astype(z_out_ref.dtype)


def _prepare_operands(W, b, C, n_books, l_word, tau_q):
    """Build the two fused constant operands (runs under jit, folds/fuses)."""
    n_words, m = C.shape
    g = n_books * n_words
    C = C.astype(jnp.float32)
    W = W.astype(jnp.float32)
    b = b.astype(jnp.float32)

    C3 = C.reshape(n_words, n_books, l_word)                 # (W, Bk, L)
    blocks = jnp.transpose(C3, (1, 2, 0))                    # (Bk, L, W) = C_i^T
    eye = jnp.eye(n_books, dtype=jnp.float32)

    # Block-diagonal C^T: c_bd[(i,l), (c,w)] = C_i[w, l] if i == c else 0.
    c_bd = jnp.einsum('blw,bc->blcw', blocks, eye).reshape(m, g)   # (M, G)
    c_cross = (2.0 * tau_q) * c_bd                                  # (M, G)

    # Per-column bias: -tau * ||C_i[w]||^2, shape (1, G).
    c_bias = (-tau_q) * jnp.transpose(jnp.sum(C3 * C3, axis=2)).reshape(1, g)

    # Fused fc + logits operands.
    w_cat = jnp.concatenate([W, W @ c_cross], axis=1)               # (512, M+G)
    b_cat = jnp.concatenate([b, b @ c_cross + c_bias], axis=1)      # (1, M+G)

    # Fused segmented-sum + Z-numerator operand: [seg_ones_M | C_bd^T], (G, 2M).
    seg_ones_m = jnp.kron(eye, jnp.ones((n_words, l_word), jnp.float32))
    comb = jnp.concatenate([seg_ones_m, jnp.transpose(c_bd)], axis=1)

    return w_cat, b_cat, comb


def _pick_batch_tile(B, max_tile=2048, min_tile=256, target_steps=8):
    """Tile big enough to amortize ~0.35us/step and hit the HBM roofline on the
    dominant (tb, 512) f32 input stream, small enough that the grid keeps
    >= 2 steps per v7x TensorCore and tb <= 2048 stays inside v5e's 16 MiB
    scoped-VMEM default (double-buffered input at tb=2048 is ~8 MiB)."""
    if B <= min_tile:
        return B                               # single step, block == full dim
    tb = -(-B // target_steps)                 # cdiv: aim for ~target_steps
    tb = ((tb + 7) // 8) * 8                   # sublane multiple of 8
    return max(min_tile, min(tb, max_tile, B))


@functools.partial(jax.jit,
                   static_argnames=("n_books", "l_word", "tau_q", "batch_tile"))
def quantization_head_forward(inp, W, b, C, *, n_books, l_word, tau_q,
                              batch_tile=2048):
    """inp: (B, 512); W: (512, M); b: (1, M); C: (N_words, M), M = n_books*l_word.
    Returns (X, Z) exactly like Quantization_Head.forward."""
    B, in_dim = inp.shape
    M = W.shape[1]
    n_words = C.shape[0]
    G = n_books * n_words

    w_cat, b_cat, comb = _prepare_operands(W, b, C, n_books, l_word, tau_q)

    tb = _pick_batch_tile(B, max_tile=batch_tile)
    grid = (pl.cdiv(B, tb),)

    const = lambda i: (0, 0)
    batched = lambda i: (i, 0)

    return pl.pallas_call(
        _quant_head_kernel,
        grid=grid,
        in_specs=[
            pl.BlockSpec((tb, in_dim), batched),      # input activations
            pl.BlockSpec((in_dim, M + G), const),     # [W | W@(2tau C_bd)]
            pl.BlockSpec((1, M + G), const),          # fused bias
            pl.BlockSpec((G, 2 * M), const),          # [seg_ones_M | C_bd^T]
        ],
        out_specs=[
            pl.BlockSpec((tb, M), batched),           # X
            pl.BlockSpec((tb, M), batched),           # Z
        ],
        out_shape=[
            jax.ShapeDtypeStruct((B, M), jnp.float32),
            jax.ShapeDtypeStruct((B, M), jnp.float32),
        ],
        compiler_params=pltpu.CompilerParams(
            dimension_semantics=("parallel",)),
    )(inp, w_cat, b_cat, comb)


def _reference_forward(inp, W, b, C, *, n_books, l_word, tau_q):
    X = inp @ W + b
    zs = []
    for i in range(n_books):
        xi = X[:, i * l_word:(i + 1) * l_word]
        ci = C[:, i * l_word:(i + 1) * l_word]
        dist = (jnp.sum(xi * xi, axis=1, keepdims=True)
                + jnp.sum(ci * ci, axis=1)[None, :]
                - 2.0 * xi @ ci.T)
        soft = jax.nn.softmax(-tau_q * dist, axis=-1)
        zs.append(soft @ ci)
    return X, jnp.concatenate(zs, axis=1)


if __name__ == "__main__":
    # Small, module-consistent shapes.
    B = 8                 # batch
    IN_DIM = 512          # fixed by nn.Linear(512, ...)
    N_books = 4
    L_word = 8
    N_words = 16
    tau_q = 5.0
    M = N_books * L_word

    key = jax.random.PRNGKey(0)
    k_in, k_w, k_b, k_c, k_in2 = jax.random.split(key, 5)

    # Deterministic parameter init (mirrors xavier_uniform_ / Linear defaults).
    w_bound = float(np.sqrt(6.0 / (IN_DIM + M)))
    W = jax.random.uniform(k_w, (IN_DIM, M), jnp.float32, -w_bound, w_bound)
    b_bound = float(1.0 / np.sqrt(IN_DIM))
    b = jax.random.uniform(k_b, (1, M), jnp.float32, -b_bound, b_bound)
    c_bound = float(np.sqrt(6.0 / (N_words + M)))
    C = jax.random.uniform(k_c, (N_words, M), jnp.float32, -c_bound, c_bound)

    x_in = jax.random.normal(k_in, (B, IN_DIM), jnp.float32)

    X_out, Z_out = quantization_head_forward(
        x_in, W, b, C, n_books=N_books, l_word=L_word, tau_q=tau_q)
    jax.block_until_ready((X_out, Z_out))

    X_ref, Z_ref = _reference_forward(
        x_in, W, b, C, n_books=N_books, l_word=L_word, tau_q=tau_q)
    np.testing.assert_allclose(np.asarray(X_out), np.asarray(X_ref),
                               rtol=1e-5, atol=1e-5)
    # Z uses approx reciprocal (EUP) + algebraically rearranged logits -> ~1e-3.
    np.testing.assert_allclose(np.asarray(Z_out), np.asarray(Z_ref),
                               rtol=2e-3, atol=2e-3)

    # Larger batch: exercises batch tiling / double-buffered pipelining
    # (tb=256, grid=8 -> >= 4 steps per v7x TensorCore).
    B2 = 2048
    x_in2 = jax.random.normal(k_in2, (B2, IN_DIM), jnp.float32)
    X2, Z2 = quantization_head_forward(
        x_in2, W, b, C, n_books=N_books, l_word=L_word, tau_q=tau_q)
    jax.block_until_ready((X2, Z2))
    X2_ref, Z2_ref = _reference_forward(
        x_in2, W, b, C, n_books=N_books, l_word=L_word, tau_q=tau_q)
    np.testing.assert_allclose(np.asarray(X2), np.asarray(X2_ref),
                               rtol=1e-5, atol=1e-5)
    np.testing.assert_allclose(np.asarray(Z2), np.asarray(Z2_ref),
                               rtol=2e-3, atol=2e-3)

    print("KERNEL_OK")
</pallas_src>

<mosaic_0001>
module attributes {stable_mosaic.version = 11 : i64} {
  func.func @_quant_head_kernel(%arg0: i32, %arg1: memref<8x512xf32, #tpu.memory_space<vmem>>, %arg2: memref<512x96xf32, #tpu.memory_space<vmem>>, %arg3: memref<1x96xf32, #tpu.memory_space<vmem>>, %arg4: memref<64x64xf32, #tpu.memory_space<vmem>>, %arg5: memref<8x32xf32, #tpu.memory_space<vmem>>, %arg6: memref<8x32xf32, #tpu.memory_space<vmem>>) attributes {dimension_semantics = [#tpu.dimension_semantics<parallel>], iteration_bounds = array<i64: 1>, scalar_prefetch = 0 : i64, scratch_operands = 0 : i64, tpu.core_type = #tpu.core_type<tc>, window_params = [{transform_indices = @transform_0, window_bounds = array<i64: 8, 512>}, {pipeline_mode = #tpu.pipeline_mode<synchronous>, transform_indices = @transform_1, window_bounds = array<i64: 512, 96>}, {pipeline_mode = #tpu.pipeline_mode<synchronous>, transform_indices = @transform_2, window_bounds = array<i64: 1, 96>}, {pipeline_mode = #tpu.pipeline_mode<synchronous>, transform_indices = @transform_3, window_bounds = array<i64: 64, 64>}, {transform_indices = @transform_4, window_bounds = array<i64: 8, 32>}, {transform_indices = @transform_5, window_bounds = array<i64: 8, 32>}]} {
    %c0 = arith.constant 0 : index
    %c0_0 = arith.constant 0 : index
    %0 = vector.load %arg1[%c0, %c0_0] : memref<8x512xf32, #tpu.memory_space<vmem>>, vector<8x512xf32>
    %c0_1 = arith.constant 0 : index
    %c0_2 = arith.constant 0 : index
    %1 = vector.load %arg2[%c0_1, %c0_2] : memref<512x96xf32, #tpu.memory_space<vmem>>, vector<512x96xf32>
    %cst = arith.constant dense<0.000000e+00> : vector<8x96xf32>
    %2 = tpu.matmul %0, %1, %cst {dimension_numbers = #tpu.dot_dimension_numbers<[1], [0], [0], [1], [0, 0, 1, 1], [], []>} : vector<8x512xf32>, vector<512x96xf32>, vector<8x96xf32> -> vector<8x96xf32>
    %c0_3 = arith.constant 0 : index
    %c0_4 = arith.constant 0 : index
    %3 = vector.load %arg3[%c0_3, %c0_4] : memref<1x96xf32, #tpu.memory_space<vmem>>, vector<1x96xf32>
    %4 = vector.broadcast %3 : vector<1x96xf32> to vector<8x96xf32>
    %5 = arith.addf %2, %4 : vector<8x96xf32>
    %6 = vector.extract_strided_slice %5 {offsets = [0, 0], sizes = [8, 32], strides = [1, 1]} : vector<8x96xf32> to vector<8x32xf32>
    %7 = vector.extract_strided_slice %5 {offsets = [0, 32], sizes = [8, 64], strides = [1, 1]} : vector<8x96xf32> to vector<8x64xf32>
    %c0_5 = arith.constant 0 : index
    %c0_6 = arith.constant 0 : index
    %8 = vector.load %arg5[%c0_5, %c0_6] : memref<8x32xf32, #tpu.memory_space<vmem>>, vector<8x32xf32>
    tpu.vector_store %arg5[%c0_5, %c0_6], %6 {strides = array<i32>} : memref<8x32xf32, #tpu.memory_space<vmem>>, vector<8x32xf32>,
    %cst_7 = arith.constant dense<0xFF800000> : vector<8xf32>
    %9 = vector.multi_reduction <maximumf>, %7, %cst_7 [1] : vector<8x64xf32> to vector<8xf32>
    %10 = vector.shape_cast %9 : vector<8xf32> to vector<8x1xf32>
    %11 = vector.broadcast %10 : vector<8x1xf32> to vector<8x64xf32>
    %12 = arith.subf %7, %11 : vector<8x64xf32>
    %13 = math.exp %12 : vector<8x64xf32>
    %c0_8 = arith.constant 0 : index
    %c0_9 = arith.constant 0 : index
    %14 = vector.load %arg4[%c0_8, %c0_9] : memref<64x64xf32, #tpu.memory_space<vmem>>, vector<64x64xf32>
    %cst_10 = arith.constant dense<0.000000e+00> : vector<8x64xf32>
    %15 = tpu.matmul %13, %14, %cst_10 {dimension_numbers = #tpu.dot_dimension_numbers<[1], [0], [0], [1], [0, 0, 1, 1], [], []>} : vector<8x64xf32>, vector<64x64xf32>, vector<8x64xf32> -> vector<8x64xf32>
    %16 = vector.extract_strided_slice %15 {offsets = [0, 0], sizes = [8, 32], strides = [1, 1]} : vector<8x64xf32> to vector<8x32xf32>
    %cst_11 = arith.constant 1.000000e-30 : f32
    %17 = vector.broadcast %cst_11 : f32 to vector<8x32xf32>
    %18 = arith.maximumf %16, %17 : vector<8x32xf32>
    %19 = vector.extract_strided_slice %15 {offsets = [0, 32], sizes = [8, 32], strides = [1, 1]} : vector<8x64xf32> to vector<8x32xf32>
    %20 = tpu.reciprocal %18 {approx = true} : vector<8x32xf32> -> vector<8x32xf32>
    %21 = arith.mulf %19, %20 : vector<8x32xf32>
    %c0_12 = arith.constant 0 : index
    %c0_13 = arith.constant 0 : index
    %22 = vector.load %arg6[%c0_12, %c0_13] : memref<8x32xf32, #tpu.memory_space<vmem>>, vector<8x32xf32>
    tpu.vector_store %arg6[%c0_12, %c0_13], %21 {strides = array<i32>} : memref<8x32xf32, #tpu.memory_space<vmem>>, vector<8x32xf32>,
    return
  }
  func.func @transform_0(%arg0: i32) -> (i32, i32) {
    %c0_i32 = arith.constant 0 : i32
    %c0_i32_0 = arith.constant 0 : i32
    return %arg0, %c0_i32 : i32, i32
  }
  func.func @transform_1(%arg0: i32) -> (i32, i32) {
    %c0_i32 = arith.constant 0 : i32
    %c0_i32_0 = arith.constant 0 : i32
    %c0_i32_1 = arith.constant 0 : i32
    return %c0_i32, %c0_i32_0 : i32, i32
  }
  func.func @transform_2(%arg0: i32) -> (i32, i32) {
    %c0_i32 = arith.constant 0 : i32
    %c0_i32_0 = arith.constant 0 : i32
    %c0_i32_1 = arith.constant 0 : i32
    return %c0_i32, %c0_i32_0 : i32, i32
  }
  func.func @transform_3(%arg0: i32) -> (i32, i32) {
    %c0_i32 = arith.constant 0 : i32
    %c0_i32_0 = arith.constant 0 : i32
    %c0_i32_1 = arith.constant 0 : i32
    return %c0_i32, %c0_i32_0 : i32, i32
  }
  func.func @transform_4(%arg0: i32) -> (i32, i32) {
    %c0_i32 = arith.constant 0 : i32
    %c0_i32_0 = arith.constant 0 : i32
    return %arg0, %c0_i32 : i32, i32
  }
  func.func @transform_5(%arg0: i32) -> (i32, i32) {
    %c0_i32 = arith.constant 0 : i32
    %c0_i32_0 = arith.constant 0 : i32
    return %arg0, %c0_i32 : i32, i32
  }
}

</mosaic_0001>

<llo_original>
// kernel: quantization_head_forward.1
$region0: #{quantization_head_forward.1}
  #allocation0 [shape = 'u32[]', space=smem, size = 0x4, offset = 0x4, fixed_abs, tag = 'smem constant byte address 0x4 - core index']
  #allocation1 [shape = 'u32[72,128]{1,0:T(1,128)}', space=vmem, size = 0x9000, scoped, tag = 'internal scratch']
  %s0 = inlined_call_operand.vmem [shape: f32[8,512], index: 0, kind: input, shape index: {}]
  %s1 = inlined_call_operand.vmem [shape: f32[512,96], index: 1, kind: input, shape index: {}]
  %s2 = inlined_call_operand.vmem [shape: f32[1,96], index: 2, kind: input, shape index: {}]
  %s3 = inlined_call_operand.vmem [shape: f32[64,64], index: 3, kind: input, shape index: {}]
  %s4 = inlined_call_operand.hbm [shape: f32[8,32], index: 4, kind: output, shape index: {0}]
  %s5 = inlined_call_operand.hbm [shape: f32[8,32], index: 5, kind: output, shape index: {1}]
  %6 = xla_tuple %s4, %s5
  %s7 = sld [smem:[#allocation0]]
  $region34: #{quantization_head_forward.1} parent=0
    _
  %s9 = ssub.s32 1, %s7
  %s10 = scalar_select 0, %s9, %s7
  $region1: #{quantization_head_forward.1} parent=0
    #allocation2 [shape = 'u8[4096]{0}', space=vmem, size = 0x1000, scoped, tag = 'output window, operand 0, single buffered']
    #allocation3 [shape = 's32[1]{0}', space=sflag, size = 0x4, scoped, tag = 'scoped memory for quantization_head_forward.1']
    #allocation4 [shape = 'u8[4096]{0}', space=vmem, size = 0x1000, scoped, tag = 'output window, operand 1, single buffered']
    #allocation5 [shape = 's32[1]{0}', space=sflag, size = 0x4, scoped, tag = 'scoped memory for quantization_head_forward.1']
    %11 = vsyncpa [#allocation3], 0
    %12 = vsyncpa [#allocation5], 0
    // Predicated region
    $region2: #{quantization_head_forward.1} parent=1 // pred_check
      _
    $region3: #{quantization_head_forward.1} parent=1 // pred_check_branch
      %14 = sbr.rel (0) target = $region5
    $region4: #{quantization_head_forward.1} parent=1 // pred_region
      _
    $region5: #{quantization_head_forward.1} parent=1 // pred_fallthru
      _
    // Predicated region
    $region6: #{quantization_head_forward.1} parent=1 // pred_check
      _
    $region7: #{quantization_head_forward.1} parent=1 // pred_check_branch
      %16 = sbr.rel (0) target = $region9
    $region8: #{quantization_head_forward.1} parent=1 // pred_region
      _
    $region9: #{quantization_head_forward.1} parent=1 // pred_fallthru
      _
    // Predicated region
    $region10: #{quantization_head_forward.1} parent=1 // pred_check
      _
    $region11: #{quantization_head_forward.1} parent=1 // pred_check_branch
      %18 = sbr.rel (0) target = $region13
    $region12: #{quantization_head_forward.1} parent=1 // pred_region
      _
    $region13: #{quantization_head_forward.1} parent=1 // pred_fallthru
      _
    // Predicated region
    $region14: #{quantization_head_forward.1} parent=1 // pred_check
      _
    $region15: #{quantization_head_forward.1} parent=1 // pred_check_branch
      %20 = sbr.rel (0) target = $region17
    $region16: #{quantization_head_forward.1} parent=1 // pred_region
      _
    $region17: #{quantization_head_forward.1} parent=1 // pred_fallthru
      _
    %v21 = vld [vmem:[%s0] sm:$0xff]
    %v22 = vld [vmem:[%s0 + $0x8] sm:$0xff]
    %v23 = vld [vmem:[%s0 + $0x10] sm:$0xff]
    %v24 = vld [vmem:[%s0 + $0x18] sm:$0xff]
    %v25 = vld [vmem:[%s1] sm:$0xff]
    %v26 = vld [vmem:[%s1 + $0x8] sm:$0xff]
    %v27 = vld [vmem:[%s1 + $0x10] sm:$0xff]
    %v28 = vld [vmem:[%s1 + $0x18] sm:$0xff]
    %v29 = vld [vmem:[%s1 + $0x20] sm:$0xff]
    %v30 = vld [vmem:[%s1 + $0x28] sm:$0xff]
    %v31 = vld [vmem:[%s1 + $0x30] sm:$0xff]
    %v32 = vld [vmem:[%s1 + $0x38] sm:$0xff]
    %v33 = vld [vmem:[%s1 + $0x40] sm:$0xff]
    %v34 = vld [vmem:[%s1 + $0x48] sm:$0xff]
    %v35 = vld [vmem:[%s1 + $0x50] sm:$0xff]
    %v36 = vld [vmem:[%s1 + $0x58] sm:$0xff]
    %v37 = vld [vmem:[%s1 + $0x60] sm:$0xff]
    %v38 = vld [vmem:[%s1 + $0x68] sm:$0xff]
    %v39 = vld [vmem:[%s1 + $0x70] sm:$0xff]
    %v40 = vld [vmem:[%s1 + $0x78] sm:$0xff]
    %v41 = vld [vmem:[%s1 + $0x80] sm:$0xff]
    %v42 = vld [vmem:[%s1 + $0x88] sm:$0xff]
    %v43 = vld [vmem:[%s1 + $0x90] sm:$0xff]
    %v44 = vld [vmem:[%s1 + $0x98] sm:$0xff]
    %v45 = vld [vmem:[%s1 + $0xa0] sm:$0xff]
    %v46 = vld [vmem:[%s1 + $0xa8] sm:$0xff]
    %v47 = vld [vmem:[%s1 + $0xb0] sm:$0xff]
    %v48 = vld [vmem:[%s1 + $0xb8] sm:$0xff]
    %v49 = vld [vmem:[%s1 + $0xc0] sm:$0xff]
    %v50 = vld [vmem:[%s1 + $0xc8] sm:$0xff]
    %v51 = vld [vmem:[%s1 + $0xd0] sm:$0xff]
    %v52 = vld [vmem:[%s1 + $0xd8] sm:$0xff]
    %v53 = vld [vmem:[%s1 + $0xe0] sm:$0xff]
    %v54 = vld [vmem:[%s1 + $0xe8] sm:$0xff]
    %v55 = vld [vmem:[%s1 + $0xf0] sm:$0xff]
    %v56 = vld [vmem:[%s1 + $0xf8] sm:$0xff]
    %v57 = vld [vmem:[%s1 + $0x100] sm:$0xff]
    %v58 = vld [vmem:[%s1 + $0x108] sm:$0xff]
    %v59 = vld [vmem:[%s1 + $0x110] sm:$0xff]
    %v60 = vld [vmem:[%s1 + $0x118] sm:$0xff]
    %v61 = vld [vmem:[%s1 + $0x120] sm:$0xff]
    %v62 = vld [vmem:[%s1 + $0x128] sm:$0xff]
    %v63 = vld [vmem:[%s1 + $0x130] sm:$0xff]
    %v64 = vld [vmem:[%s1 + $0x138] sm:$0xff]
    %v65 = vld [vmem:[%s1 + $0x140] sm:$0xff]
    %v66 = vld [vmem:[%s1 + $0x148] sm:$0xff]
    %v67 = vld [vmem:[%s1 + $0x150] sm:$0xff]
    %v68 = vld [vmem:[%s1 + $0x158] sm:$0xff]
    %v69 = vld [vmem:[%s1 + $0x160] sm:$0xff]
    %v70 = vld [vmem:[%s1 + $0x168] sm:$0xff]
    %v71 = vld [vmem:[%s1 + $0x170] sm:$0xff]
    %v72 = vld [vmem:[%s1 + $0x178] sm:$0xff]
    %v73 = vld [vmem:[%s1 + $0x180] sm:$0xff]
    %v74 = vld [vmem:[%s1 + $0x188] sm:$0xff]
    %v75 = vld [vmem:[%s1 + $0x190] sm:$0xff]
    %v76 = vld [vmem:[%s1 + $0x198] sm:$0xff]
    %v77 = vld [vmem:[%s1 + $0x1a0] sm:$0xff]
    %v78 = vld [vmem:[%s1 + $0x1a8] sm:$0xff]
    %v79 = vld [vmem:[%s1 + $0x1b0] sm:$0xff]
    %v80 = vld [vmem:[%s1 + $0x1b8] sm:$0xff]
    %v81 = vld [vmem:[%s1 + $0x1c0] sm:$0xff]
    %v82 = vld [vmem:[%s1 + $0x1c8] sm:$0xff]
    %v83 = vld [vmem:[%s1 + $0x1d0] sm:$0xff]
    %v84 = vld [vmem:[%s1 + $0x1d8] sm:$0xff]
    %v85 = vld [vmem:[%s1 + $0x1e0] sm:$0xff]
    %v86 = vld [vmem:[%s1 + $0x1e8] sm:$0xff]
    %v87 = vld [vmem:[%s1 + $0x1f0] sm:$0xff]
    %v88 = vld [vmem:[%s1 + $0x1f8] sm:$0xff]
    %v89 = vld [vmem:[%s2] sm:$0x1]
    %v91 = vperm.slane %v89, 0
    %93 = vmatpush.msra.mxu0 %v40
    %94 = vmatpush.msra.mxu0 %v39
    %95 = vmatpush.msra.mxu0 %v38
    %96 = vmatpush.msra.mxu0 %v37
    %97 = vmatpush.msra.mxu0 %v36
    %98 = vmatpush.msra.mxu0 %v35
    %99 = vmatpush.msra.mxu0 %v34
    %100 = vmatpush.msra.mxu0 %v33
    %101 = vmatpush.msra.mxu0 %v32
    %102 = vmatpush.msra.mxu0 %v31
    %103 = vmatpush.msra.mxu0 %v30
    %104 = vmatpush.msra.mxu0 %v29
    %105 = vmatpush.msra.mxu0 %v28
    %106 = vmatpush.msra.mxu0 %v27
    %107 = vmatpush.msra.mxu0 %v26
    %108 = vmatpush.msra.mxu0 %v25
    %109 = vmatmul.f32.gmra.mxu0 %v21
    %v110 = vpop.f32.mrf.mxu0
    %v111 = vadd.f32 %v91, %v110
    %112 = vdwg.mxu0
    %113 = vmatpush.msra.mxu0 %v56
    %114 = vmatpush.msra.mxu0 %v55
    %115 = vmatpush.msra.mxu0 %v54
    %116 = vmatpush.msra.mxu0 %v53
    %117 = vmatpush.msra.mxu0 %v52
    %118 = vmatpush.msra.mxu0 %v51
    %119 = vmatpush.msra.mxu0 %v50
    %120 = vmatpush.msra.mxu0 %v49
    %121 = vmatpush.msra.mxu0 %v48
    %122 = vmatpush.msra.mxu0 %v47
    %123 = vmatpush.msra.mxu0 %v46
    %124 = vmatpush.msra.mxu0 %v45
    %125 = vmatpush.msra.mxu0 %v44
    %126 = vmatpush.msra.mxu0 %v43
    %127 = vmatpush.msra.mxu0 %v42
    %128 = vmatpush.msra.mxu0 %v41
    %129 = vmatmul.f32.gmra.mxu0 %v22
    %v130 = vpop.f32.mrf.mxu0
    %v131 = vadd.f32 %v111, %v130
    %132 = vdwg.mxu0
    %133 = vmatpush.msra.mxu0 %v72
    %134 = vmatpush.msra.mxu0 %v71
    %135 = vmatpush.msra.mxu0 %v70
    %136 = vmatpush.msra.mxu0 %v69
    %137 = vmatpush.msra.mxu0 %v68
    %138 = vmatpush.msra.mxu0 %v67
    %139 = vmatpush.msra.mxu0 %v66
    %140 = vmatpush.msra.mxu0 %v65
    %141 = vmatpush.msra.mxu0 %v64
    %142 = vmatpush.msra.mxu0 %v63
    %143 = vmatpush.msra.mxu0 %v62
    %144 = vmatpush.msra.mxu0 %v61
    %145 = vmatpush.msra.mxu0 %v60
    %146 = vmatpush.msra.mxu0 %v59
    %147 = vmatpush.msra.mxu0 %v58
    %148 = vmatpush.msra.mxu0 %v57
    %149 = vmatmul.f32.gmra.mxu0 %v23
    %v150 = vpop.f32.mrf.mxu0
    %v151 = vadd.f32 %v131, %v150
    %152 = vdwg.mxu0
    %153 = vmatpush.msra.mxu0 %v88
    %154 = vmatpush.msra.mxu0 %v87
    %155 = vmatpush.msra.mxu0 %v86
    %156 = vmatpush.msra.mxu0 %v85
    %157 = vmatpush.msra.mxu0 %v84
    %158 = vmatpush.msra.mxu0 %v83
    %159 = vmatpush.msra.mxu0 %v82
    %160 = vmatpush.msra.mxu0 %v81
    %161 = vmatpush.msra.mxu0 %v80
    %162 = vmatpush.msra.mxu0 %v79
    %163 = vmatpush.msra.mxu0 %v78
    %164 = vmatpush.msra.mxu0 %v77
    %165 = vmatpush.msra.mxu0 %v76
    %166 = vmatpush.msra.mxu0 %v75
    %167 = vmatpush.msra.mxu0 %v74
    %168 = vmatpush.msra.mxu0 %v73
    %169 = vmatmul.f32.gmra.mxu0 %v24
    %v170 = vpop.f32.mrf.mxu0
    %v171 = vadd.f32 %v151, %v170
    %172 = vdwg.mxu0
    %vm173 = vcmask 261120
    %174 = vst.msk [vmem:[#allocation2] sm:$0xff] %vm173, %v171
    %vm175 = vcmask 785664
    %v176 = vsel %vm175, %v171, -inf
    %177 = vmax.xlane.f32.xlu0 %v176
    %v178 = vpop.xlane.xlu0 %177
    %v179 = vsub.f32 %v171, %v178
    %v180 = vmul.f32 %v179, 1.442695
    %v181 = vpow.pop %v180
    %v182 = vld [vmem:[%s3] sm:$0xff]
    %v183 = vld [vmem:[%s3 + $0x8] sm:$0xff]
    %v184 = vld [vmem:[%s3 + $0x10] sm:$0xff]
    %v185 = vld [vmem:[%s3 + $0x18] sm:$0xff]
    %v186 = vld [vmem:[%s3 + $0x20] sm:$0xff]
    %v187 = vld [vmem:[%s3 + $0x28] sm:$0xff]
    %v188 = vld [vmem:[%s3 + $0x30] sm:$0xff]
    %v189 = vld [vmem:[%s3 + $0x38] sm:$0xff]
    %191 = vrot.lane.b32.xlu0 %v181, 96
    %v192 = vpop.permute.xlu0 %191
    %vm193 = vcmask 523264
    %v194 = vsel %vm193, %v192, 0
    %196 = vmatpush.msra.mxu0 0.0
    %197 = vmatpush.msra.mxu0 0.0
    %198 = vmatpush.msra.mxu0 0.0
    %199 = vmatpush.msra.mxu0 0.0
    %200 = vmatpush.msra.mxu0 0.0
    %201 = vmatpush.msra.mxu0 0.0
    %202 = vmatpush.msra.mxu0 0.0
    %203 = vmatpush.msra.mxu0 0.0
    %204 = vmatpush.msra.mxu0 %v189
    %205 = vmatpush.msra.mxu0 %v188
    %206 = vmatpush.msra.mxu0 %v187
    %207 = vmatpush.msra.mxu0 %v186
    %208 = vmatpush.msra.mxu0 %v185
    %209 = vmatpush.msra.mxu0 %v184
    %210 = vmatpush.msra.mxu0 %v183
    %211 = vmatpush.msra.mxu0 %v182
    %212 = vmatmul.f32.gmra.mxu0 %v194
    %v213 = vpop.f32.mrf.mxu0
    %v214 = vadd.f32 0.0, %v213
    %215 = vdwg.mxu0
    %v216 = vmax.f32 %v214, 1e-30
    %v217 = vrcp.pop %v216
    %219 = vrot.lane.b32.xlu0 %v217, 32
    %v220 = vpop.permute.xlu0 %219
    %v222 = vmul.f32 %v214, %v220
    %224 = vrot.lane.b32.xlu0 %v222, 96
    %v225 = vpop.permute.xlu0 %224
    %227 = vst.msk [vmem:[#allocation4] sm:$0xff] %vm173, %v225
    // Predicated region
    $region18: #{quantization_head_forward.1} parent=1 // pred_check
      _
    $region19: #{quantization_head_forward.1} parent=1 // pred_check_branch
      %229 = sbr.rel (0) target = $region21
    $region20: #{quantization_head_forward.1} parent=1 // pred_region
      %231 = vsyncadd [#allocation3], 0
      %s233 = sshll.u32 [#allocation2], 4
      %s234 = int_to_ptr.vmem [resolvable:$true] %s233
      %s235 = sshll.u32 %s4, 4
      %s236 = int_to_ptr.hbm [resolvable:$true] %s235
      %238 = dma.vmem_to_hbm [thread:$0]  %s234, 128, %s236, [#allocation3]
    $region21: #{quantization_head_forward.1} parent=1 // pred_fallthru
      _
    // Predicated region
    $region22: #{quantization_head_forward.1} parent=1 // pred_check
      _
    $region23: #{quantization_head_forward.1} parent=1 // pred_check_branch
      %240 = sbr.rel (0) target = $region25
    $region24: #{quantization_head_forward.1} parent=1 // pred_region
      %242 = vsyncadd [#allocation5], 0
      %s244 = sshll.u32 [#allocation4], 4
      %s245 = int_to_ptr.vmem [resolvable:$true] %s244
      %s246 = sshll.u32 %s5, 4
      %s247 = int_to_ptr.hbm [resolvable:$true] %s246
      %249 = dma.vmem_to_hbm [thread:$0]  %s245, 128, %s247, [#allocation5]
    $region25: #{quantization_head_forward.1} parent=1 // pred_fallthru
      _
    // Predicated region
    $region26: #{quantization_head_forward.1} parent=1 // pred_check
      _
    $region27: #{quantization_head_forward.1} parent=1 // pred_check_branch
      %251 = sbr.rel (0) target = $region29
    $region28: #{quantization_head_forward.1} parent=1 // pred_region
      %253 = dma.done [#allocation3], 128
    $region29: #{quantization_head_forward.1} parent=1 // pred_fallthru
      _
    // Predicated region
    $region30: #{quantization_head_forward.1} parent=1 // pred_check
      _
    $region31: #{quantization_head_forward.1} parent=1 // pred_check_branch
      %255 = sbr.rel (0) target = $region33
    $region32: #{quantization_head_forward.1} parent=1 // pred_region
      %257 = dma.done [#allocation5], 128
    $region33: #{quantization_head_forward.1} parent=1 // pred_fallthru
      _
    %258 = vsyncpa [#allocation3], 1
    %259 = vsyncpa [#allocation5], 1

</llo_original>
